<compile_context>
chip_gen: v5e
topology: v5e:2x2
jax: 0.10.0
libtpu: 0.0.40
codegen_flags: <defaults>
</compile_context>

<pallas_src>
import functools

import jax
import jax.numpy as jnp
from jax.experimental import pallas as pl
from jax.experimental.pallas import tpu as pltpu

LANES = 128
SUBLANES = 8
MAX_BLOCK_BYTES = 4 * 1024 * 1024      # per input, per pipeline buffer
VMEM_LIMIT_BYTES = 48 * 1024 * 1024    # covers masked f32 double-buffered blocks; < v7x 64 MiB


def _round_up(x, m):
    return ((x + m - 1) // m) * m


def _num_tensorcores():
    """2 on v7x (2 TensorCores per chip), else 1.  Only affects grid chunking."""
    # TODO(synk): switch to pltpu.get_tpu_info() once it exposes a per-chip core count.
    try:
        kind = jax.devices()[0].device_kind.lower()
    except Exception:
        return 1
    return 2 if ("v7" in kind or "tpu7" in kind) else 1


def _charbonnier_err(i0, i1, *, alpha, eps):
    """((i0 - i1)^2 + eps)^alpha in f32, widening narrow inputs in place."""
    d = i0.astype(jnp.float32) - i1.astype(jnp.float32)
    base = d * d + jnp.float32(eps)
    if alpha == 0.5:
        return jnp.sqrt(base)            # EUP path
    if alpha == 1.0:
        return base
    # General alpha via exp/log on the EUP (base > 0 always since eps > 0).
    return jnp.exp(jnp.float32(alpha) * jnp.log(base))


def _tile_partial_sum(x):
    """(block_rows, 128) -> (1, 8, 128) partial sum via pure vreg adds.

    For large blocks, split into 4 independent accumulator chains (two-stage sum)
    so VALU add latency never becomes the exposed cost on v7x bf16."""
    t = x.reshape(-1, SUBLANES, LANES)
    r = t.shape[0]
    if r > 4 and r % 4 == 0:
        t = t.reshape(r // 4, 4, SUBLANES, LANES).sum(axis=0)
        t = t.sum(axis=0)
    else:
        t = t.sum(axis=0)
    return t[None]


def _charbonnier_kernel(i0_ref, i1_ref, out_ref, *, alpha, eps, full_rows,
                        block_rows, steps_per_chunk, num_full_blocks, edge_mask):
    c = pl.program_id(0)
    i = pl.program_id(1)

    @pl.when(i == 0)
    def _():
        out_ref[...] = jnp.zeros_like(out_ref)

    err = _charbonnier_err(i0_ref[...], i1_ref[...], alpha=alpha, eps=eps)

    if not edge_mask:
        out_ref[...] += _tile_partial_sum(err)
    else:
        step = c * steps_per_chunk + i

        @pl.when(step < num_full_blocks)
        def _():
            out_ref[...] += _tile_partial_sum(err)

        @pl.when(step >= num_full_blocks)
        def _():
            # Kill ragged / duplicated rows with a select (NaN-safe).
            row = (jax.lax.broadcasted_iota(jnp.int32, err.shape, 0)
                   + step * block_rows)
            out_ref[...] += _tile_partial_sum(jnp.where(row < full_rows, err, 0.0))


def _charbonnier_masked_kernel(i0_ref, i1_ref, m_ref, err_out_ref, m_out_ref, *,
                               alpha, eps, full_rows, block_rows, steps_per_chunk,
                               num_full_blocks, edge_mask):
    c = pl.program_id(0)
    i = pl.program_id(1)

    @pl.when(i == 0)
    def _():
        err_out_ref[...] = jnp.zeros_like(err_out_ref)
        m_out_ref[...] = jnp.zeros_like(m_out_ref)

    err = _charbonnier_err(i0_ref[...], i1_ref[...], alpha=alpha, eps=eps)
    m = m_ref[...].astype(jnp.float32)     # widen narrow mask per tile

    if not edge_mask:
        err_out_ref[...] += _tile_partial_sum(err * m)
        m_out_ref[...] += _tile_partial_sum(m)
    else:
        step = c * steps_per_chunk + i

        @pl.when(step < num_full_blocks)
        def _():
            err_out_ref[...] += _tile_partial_sum(err * m)
            m_out_ref[...] += _tile_partial_sum(m)

        @pl.when(step >= num_full_blocks)
        def _():
            row = (jax.lax.broadcasted_iota(jnp.int32, err.shape, 0)
                   + step * block_rows)
            valid = row < full_rows
            err_out_ref[...] += _tile_partial_sum(jnp.where(valid, err * m, 0.0))
            m_out_ref[...] += _tile_partial_sum(jnp.where(valid, m, 0.0))


def charbonnier_loss(i0, i1, mask=None, *, alpha, eps=1e-6):
    """Pallas equivalent of CharbonnierLoss(alpha, eps).forward(I0, I1, mask)."""
    assert i0.shape == i1.shape, "I0/I1 shapes must match"
    total_n = i0.size

    if mask is not None:
        if mask.shape != i0.shape:
            # mean(mask) over a broadcast mask equals mean over the original, so
            # broadcasting keeps the reference semantics.
            # TODO(synk): a dedicated mask index_map would avoid materializing this copy.
            mask = jnp.broadcast_to(mask, i0.shape)
        if mask.dtype == jnp.bool_:
            mask = mask.astype(jnp.int8)   # stay narrow; widened per tile in-kernel

    full_rows, rem = divmod(total_n, LANES)
    n_main = full_rows * LANES

    i0f = i0.reshape(-1)
    i1f = i1.reshape(-1)
    mf = mask.reshape(-1) if mask is not None else None

    # Ragged tail (< 128 elements): plain jnp, folded into the partial sums below.
    if rem:
        tail_err = _charbonnier_err(i0f[n_main:], i1f[n_main:], alpha=alpha, eps=eps)
        if mask is None:
            tail_err_sum = jnp.sum(tail_err)
            tail_m_sum = None
        else:
            tm = mf[n_main:].astype(jnp.float32)
            tail_err_sum = jnp.sum(tail_err * tm)
            tail_m_sum = jnp.sum(tm)
    else:
        tail_err_sum = jnp.float32(0.0)
        tail_m_sum = jnp.float32(0.0)

    if full_rows == 0:
        # Fewer than 128 elements: nothing for the kernel to do.
        if mask is None:
            return tail_err_sum / jnp.float32(total_n)
        return tail_err_sum / tail_m_sum

    def slab(x):
        if rem:
            x = x[:n_main]                 # 128-aligned prefix (no full-tensor pad)
        return x.reshape(full_rows, LANES)

    i0_2d = slab(i0f)
    i1_2d = slab(i1f)
    m_2d = slab(mf) if mask is not None else None

    # Block sizing: ~4 MiB per input per buffer, rows rounded to the widest
    # required sublane packing among the input dtypes (8 / 16 / 32).
    dtypes = [i0.dtype, i1.dtype] + ([mask.dtype] if mask is not None else [])
    itemsizes = [jnp.dtype(d).itemsize for d in dtypes]
    pack = max(SUBLANES, max(SUBLANES * max(1, 4 // s) for s in itemsizes))
    cap_rows = MAX_BLOCK_BYTES // (LANES * max(itemsizes))
    cap_rows -= cap_rows % pack
    block_rows = min(cap_rows, _round_up(full_rows, pack))

    num_blocks = pl.cdiv(full_rows, block_rows)
    num_chunks = min(_num_tensorcores(), num_blocks)   # 2 only on v7x
    steps_per_chunk = pl.cdiv(num_blocks, num_chunks)
    num_full_blocks = full_rows // block_rows
    # Static: does any grid step touch rows beyond full_rows (ragged last block
    # and/or a clamped duplicate step from the 2-TC split)?
    edge_mask = (num_chunks * steps_per_chunk * block_rows) != full_rows

    if num_chunks * steps_per_chunk == num_blocks:
        def in_map(c, i):
            return (c * steps_per_chunk + i, 0)
    else:
        def in_map(c, i):
            # Clamp so a duplicated last step never DMAs out of range; it is
            # fully masked out inside the kernel.
            return (jnp.minimum(c * steps_per_chunk + i, num_blocks - 1), 0)

    in_spec = pl.BlockSpec((block_rows, LANES), in_map)
    out_spec = pl.BlockSpec((1, SUBLANES, LANES), lambda c, i: (c, 0, 0))
    partial_shape = jax.ShapeDtypeStruct((num_chunks, SUBLANES, LANES), jnp.float32)
    compiler_params = pltpu.CompilerParams(
        dimension_semantics=("parallel", "arbitrary"),
        vmem_limit_bytes=VMEM_LIMIT_BYTES)
    common = dict(alpha=alpha, eps=eps, full_rows=full_rows, block_rows=block_rows,
                  steps_per_chunk=steps_per_chunk, num_full_blocks=num_full_blocks,
                  edge_mask=edge_mask)

    if mask is None:
        partials = pl.pallas_call(
            functools.partial(_charbonnier_kernel, **common),
            out_shape=partial_shape,
            grid_spec=pltpu.PrefetchScalarGridSpec(
                num_scalar_prefetch=0,
                grid=(num_chunks, steps_per_chunk),
                in_specs=[in_spec, in_spec],
                out_specs=out_spec,
            ),
            compiler_params=compiler_params,
        )(i0_2d, i1_2d)
        return (jnp.sum(partials) + tail_err_sum) / jnp.float32(total_n)

    err_partials, m_partials = pl.pallas_call(
        functools.partial(_charbonnier_masked_kernel, **common),
        out_shape=(partial_shape, partial_shape),
        grid_spec=pltpu.PrefetchScalarGridSpec(
            num_scalar_prefetch=0,
            grid=(num_chunks, steps_per_chunk),
            in_specs=[in_spec, in_spec, in_spec],
            out_specs=(out_spec, out_spec),
        ),
        compiler_params=compiler_params,
    )(i0_2d, i1_2d, m_2d)
    # mean(err*mask) / mean(mask) == sum(err*mask) / sum(mask)
    return (jnp.sum(err_partials) + tail_err_sum) / (jnp.sum(m_partials) + tail_m_sum)


def _reference(i0, i1, mask=None, *, alpha, eps):
    d = i0.astype(jnp.float32) - i1.astype(jnp.float32)
    err = (d * d + jnp.float32(eps)) ** alpha
    if mask is not None:
        m = jnp.broadcast_to(mask, i0.shape).astype(jnp.float32)
        return jnp.mean(err * m) / jnp.mean(m)
    return jnp.mean(err)


if __name__ == "__main__":
    key = jax.random.PRNGKey(0)
    k1, k2, k3, k4, k5, k6 = jax.random.split(key, 6)

    def check(i0, i1, mask=None, alpha=0.5, eps=1e-6, rtol=1e-5, atol=1e-6):
        got = jax.block_until_ready(
            charbonnier_loss(i0, i1, mask, alpha=alpha, eps=eps))
        want = _reference(i0, i1, mask, alpha=alpha, eps=eps)
        assert jnp.allclose(got, want, rtol=rtol, atol=atol), (got, want)

    # Primary: NCHW f32, alpha=0.5 (sqrt path), exact lane coverage, fast path.
    i0 = jax.random.normal(k1, (2, 4, 16, 16), dtype=jnp.float32)
    i1 = jax.random.normal(k2, (2, 4, 16, 16), dtype=jnp.float32)
    check(i0, i1)

    # bf16 inputs stay narrow through the pallas_call; kernel widens per tile.
    check(i0.astype(jnp.bfloat16), i1.astype(jnp.bfloat16))

    # Masked variant (f32 mask, same shape): loss = mean(err*mask) / mean(mask).
    mask = (jax.random.uniform(k3, (2, 4, 16, 16)) > 0.3).astype(jnp.float32)
    check(i0, i1, mask)

    # Larger tensor, general-alpha exp/log path, two-stage partial sum.
    a = jax.random.normal(k4, (3, 8, 100, 128), dtype=jnp.float32)
    b = jax.random.normal(k5, (3, 8, 100, 128), dtype=jnp.float32)
    check(a, b, alpha=0.45, rtol=1e-4, atol=1e-5)

    # Bool mask broadcast over the channel dim -> streamed as int8, widened in-kernel.
    bool_mask = jax.random.uniform(k6, (3, 1, 100, 128)) > 0.5
    check(a, b, bool_mask, alpha=0.45, rtol=1e-4, atol=1e-5)

    # Ragged tail (total not a multiple of 128): kernel on 128-aligned prefix,
    # jnp tail fold, edge-only masking inside the kernel.
    check(i0[:, :3, :15, :11], i1[:, :3, :15, :11])
    check(i0[:, :3, :15, :11], i1[:, :3, :15, :11], mask[:, :3, :15, :11])

    print("KERNEL_OK")
</pallas_src>

<mosaic_0001>
module attributes {stable_mosaic.version = 11 : i64} {
  func.func @_charbonnier_kernel(%arg0: i32, %arg1: i32, %arg2: memref<16x128xf32, #tpu.memory_space<vmem>>, %arg3: memref<16x128xf32, #tpu.memory_space<vmem>>, %arg4: memref<1x8x128xf32, #tpu.memory_space<vmem>>) attributes {dimension_semantics = [#tpu.dimension_semantics<parallel>, #tpu.dimension_semantics<arbitrary>], iteration_bounds = array<i64: 1, 1>, scalar_prefetch = 0 : i64, scratch_operands = 0 : i64, tpu.core_type = #tpu.core_type<tc>, window_params = [{transform_indices = @transform_0, window_bounds = array<i64: 16, 128>}, {transform_indices = @transform_1, window_bounds = array<i64: 16, 128>}, {transform_indices = @transform_2, window_bounds = array<i64: 1, 8, 128>}]} {
    %c0_i32 = arith.constant 0 : i32
    %0 = arith.cmpi eq, %arg1, %c0_i32 : i32
    %1 = arith.extui %0 : i1 to i32
    %c0_i32_0 = arith.constant 0 : i32
    %2 = arith.cmpi ne, %1, %c0_i32_0 : i32
    scf.if %2 {
      %cst_11 = arith.constant 0.000000e+00 : f32
      %16 = vector.broadcast %cst_11 : f32 to vector<1x8x128xf32>
      %c0_12 = arith.constant 0 : index
      %c0_13 = arith.constant 0 : index
      %c0_14 = arith.constant 0 : index
      %17 = vector.load %arg4[%c0_12, %c0_13, %c0_14] : memref<1x8x128xf32, #tpu.memory_space<vmem>>, vector<1x8x128xf32>
      tpu.vector_store %arg4[%c0_12, %c0_13, %c0_14], %16 {strides = array<i32>} : memref<1x8x128xf32, #tpu.memory_space<vmem>>, vector<1x8x128xf32>,
    } else {
    }
    %c0 = arith.constant 0 : index
    %c0_1 = arith.constant 0 : index
    %3 = vector.load %arg2[%c0, %c0_1] : memref<16x128xf32, #tpu.memory_space<vmem>>, vector<16x128xf32>
    %c0_2 = arith.constant 0 : index
    %c0_3 = arith.constant 0 : index
    %4 = vector.load %arg3[%c0_2, %c0_3] : memref<16x128xf32, #tpu.memory_space<vmem>>, vector<16x128xf32>
    %5 = arith.subf %3, %4 : vector<16x128xf32>
    %6 = arith.mulf %5, %5 : vector<16x128xf32>
    %cst = arith.constant 9.99999997E-7 : f32
    %7 = vector.broadcast %cst : f32 to vector<16x128xf32>
    %8 = arith.addf %6, %7 : vector<16x128xf32>
    %9 = math.sqrt %8 : vector<16x128xf32>
    %c0_4 = arith.constant 0 : index
    %c0_5 = arith.constant 0 : index
    %c0_6 = arith.constant 0 : index
    %10 = vector.load %arg4[%c0_4, %c0_5, %c0_6] : memref<1x8x128xf32, #tpu.memory_space<vmem>>, vector<1x8x128xf32>
    %11 = vector.shape_cast %9 : vector<16x128xf32> to vector<2x8x128xf32>
    %cst_7 = arith.constant dense<0.000000e+00> : vector<8x128xf32>
    %12 = vector.multi_reduction <add>, %11, %cst_7 [0] : vector<2x8x128xf32> to vector<8x128xf32>
    %13 = vector.shape_cast %12 : vector<8x128xf32> to vector<1x8x128xf32>
    %14 = arith.addf %10, %13 : vector<1x8x128xf32>
    %c0_8 = arith.constant 0 : index
    %c0_9 = arith.constant 0 : index
    %c0_10 = arith.constant 0 : index
    %15 = vector.load %arg4[%c0_8, %c0_9, %c0_10] : memref<1x8x128xf32, #tpu.memory_space<vmem>>, vector<1x8x128xf32>
    tpu.vector_store %arg4[%c0_8, %c0_9, %c0_10], %14 {strides = array<i32>} : memref<1x8x128xf32, #tpu.memory_space<vmem>>, vector<1x8x128xf32>,
    return
  }
  func.func @transform_0(%arg0: i32, %arg1: i32) -> (i32, i32) {
    %c1_i32 = arith.constant 1 : i32
    %0 = arith.muli %arg0, %c1_i32 : i32
    %1 = arith.addi %0, %arg1 : i32
    %c0_i32 = arith.constant 0 : i32
    %c0_i32_0 = arith.constant 0 : i32
    return %1, %c0_i32 : i32, i32
  }
  func.func @transform_1(%arg0: i32, %arg1: i32) -> (i32, i32) {
    %c1_i32 = arith.constant 1 : i32
    %0 = arith.muli %arg0, %c1_i32 : i32
    %1 = arith.addi %0, %arg1 : i32
    %c0_i32 = arith.constant 0 : i32
    %c0_i32_0 = arith.constant 0 : i32
    return %1, %c0_i32 : i32, i32
  }
  func.func @transform_2(%arg0: i32, %arg1: i32) -> (i32, i32, i32) {
    %c0_i32 = arith.constant 0 : i32
    %c0_i32_0 = arith.constant 0 : i32
    %c0_i32_1 = arith.constant 0 : i32
    return %arg0, %c0_i32, %c0_i32_0 : i32, i32, i32
  }
}

</mosaic_0001>

<llo_original>
// kernel: tpu_custom_call.1
$region0: #{tpu_custom_call.1}
  #allocation0 [shape = 'u32[]', space=smem, size = 0x4, offset = 0x4, fixed_abs, tag = 'smem constant byte address 0x4 - core index']
  #allocation1 [shape = 'u32[72,128]{1,0:T(1,128)}', space=vmem, size = 0x9000, scoped, tag = 'internal scratch']
  %s0 = inlined_call_operand.hbm [shape: f32[16,128], index: 0, kind: input, shape index: {}]
  %s1 = inlined_call_operand.hbm [shape: f32[16,128], index: 1, kind: input, shape index: {}]
  %s2 = inlined_call_operand.hbm [shape: f32[1,8,128], index: 2, kind: output, shape index: {}]
  %s3 = sld [smem:[#allocation0]]
  $region30: #{tpu_custom_call.1} parent=0
    _
  %s5 = ssub.s32 1, %s3
  %s6 = scalar_select 0, %s5, %s3
  $region1: #{tpu_custom_call.1} parent=0
    #allocation2 [shape = 'u8[8192]{0}', space=vmem, size = 0x2000, scoped, tag = 'input window, operand 0, single buffered']
    #allocation3 [shape = 's32[1]{0}', space=sflag, size = 0x4, scoped, tag = 'scoped memory for tpu_custom_call.1']
    #allocation4 [shape = 's32[1]{0}', space=sflag, size = 0x4, scoped, tag = 'scoped memory for tpu_custom_call.1']
    #allocation5 [shape = 'u8[8192]{0}', space=vmem, size = 0x2000, scoped, tag = 'input window, operand 1, single buffered']
    #allocation6 [shape = 's32[1]{0}', space=sflag, size = 0x4, scoped, tag = 'scoped memory for tpu_custom_call.1']
    #allocation7 [shape = 'u8[4096]{0}', space=vmem, size = 0x1000, scoped, tag = 'output window, operand 0, single buffered']
    %7 = vsyncpa [#allocation3], 0
    %8 = vsyncpa [#allocation6], 0
    %9 = vsyncpa [#allocation4], 0
    // Predicated region
    $region2: #{tpu_custom_call.1} parent=1 // pred_check
      _
    $region3: #{tpu_custom_call.1} parent=1 // pred_check_branch
      %11 = sbr.rel (0) target = $region5
    $region4: #{tpu_custom_call.1} parent=1 // pred_region
      %s12 = sadd.s32 0, 0
      %s13 = smul.u32 2, %s12
      %15 = vsyncadd [#allocation3], 0
      %s16 = smul.addr %s13, 8
      %s17 = scalar_lea.hbm %s0, %s16
      %s18 = sshll.u32 %s17, 4
      %s19 = int_to_ptr.hbm [resolvable:$true] %s18
      %s20 = sshll.u32 [#allocation2], 4
      %s21 = int_to_ptr.vmem [resolvable:$true] %s20
      %26 = dma.hbm_to_vmem [thread:$0]  %s19, 256, %s21, [#allocation3], 128, 128, 8
    $region5: #{tpu_custom_call.1} parent=1 // pred_fallthru
      _
    // Predicated region
    $region6: #{tpu_custom_call.1} parent=1 // pred_check
      _
    $region7: #{tpu_custom_call.1} parent=1 // pred_check_branch
      %28 = sbr.rel (0) target = $region9
    $region8: #{tpu_custom_call.1} parent=1 // pred_region
      %s29 = sadd.s32 0, 0
      %s30 = smul.u32 2, %s29
      %32 = vsyncadd [#allocation6], 0
      %s33 = smul.addr %s30, 8
      %s34 = scalar_lea.hbm %s1, %s33
      %s35 = sshll.u32 %s34, 4
      %s36 = int_to_ptr.hbm [resolvable:$true] %s35
      %s37 = sshll.u32 [#allocation5], 4
      %s38 = int_to_ptr.vmem [resolvable:$true] %s37
      %43 = dma.hbm_to_vmem [thread:$0]  %s36, 256, %s38, [#allocation6], 128, 128, 8
    $region9: #{tpu_custom_call.1} parent=1 // pred_fallthru
      _
    // Predicated region
    $region10: #{tpu_custom_call.1} parent=1 // pred_check
      _
    $region11: #{tpu_custom_call.1} parent=1 // pred_check_branch
      %45 = sbr.rel (0) target = $region13
    $region12: #{tpu_custom_call.1} parent=1 // pred_region
      %47 = dma.done [#allocation3], 256
    $region13: #{tpu_custom_call.1} parent=1 // pred_fallthru
      _
    // Predicated region
    $region14: #{tpu_custom_call.1} parent=1 // pred_check
      _
    $region15: #{tpu_custom_call.1} parent=1 // pred_check_branch
      %49 = sbr.rel (0) target = $region17
    $region16: #{tpu_custom_call.1} parent=1 // pred_region
      %51 = dma.done [#allocation6], 256
    $region17: #{tpu_custom_call.1} parent=1 // pred_fallthru
      _
    %s52 = sadd.s32 0, 0
    %s53 = smul.u32 2, %s52
    %s54 = sadd.s32 0, 0
    %s55 = smul.u32 2, %s54
    %p56 = scmp.eq.s32.totalorder 0, 0
    // Predicated region
    $region18: #{tpu_custom_call.1} parent=1 // pred_check
      %p57 = pneg %p56
    $region19: #{tpu_custom_call.1} parent=1 // pred_check_branch
      %59 = sbr.rel (%p57) target = $region21
    $region20: #{tpu_custom_call.1} parent=1 // pred_region
      %60 = vst [vmem:[#allocation7] sm:$0xff] 0.0
    $region21: #{tpu_custom_call.1} parent=1 // pred_fallthru
      _
    %v61 = vld [vmem:[#allocation2] sm:$0xff]
    %v62 = vld [vmem:[#allocation2 + $0x8] sm:$0xff]
    %v63 = vld [vmem:[#allocation5] sm:$0xff]
    %v64 = vld [vmem:[#allocation5 + $0x8] sm:$0xff]
    %v65 = vsub.f32 %v61, %v63
    %v66 = vsub.f32 %v62, %v64
    %v67 = vmul.f32 %v65, %v65
    %v68 = vmul.f32 %v66, %v66
    %v69 = vadd.f32 %v67, 1e-06
    %v70 = vadd.f32 %v68, 1e-06
    %v71 = vrsqrt.pop %v69
    %v72 = vmul.f32 %v71, %v69
    %v73 = vmul.f32 %v72, %v71
    %v74 = vmul.f32 0.5, %v73
    %v75 = vsub.f32 1.5, %v74
    %v76 = vmul.f32 %v71, %v75
    %v77 = vmul.f32 %v69, %v76
    %vm78 = vcmp.eq.f32.partialorder %v69, inf
    %v79 = vsel %vm78, %v69, %v77
    %vm80 = vcmp.eq.f32.partialorder %v69, 0.0
    %v81 = vand.u32 %v69, 2147483648
    %v82 = vsel %vm80, %v81, %v79
    %v83 = vrsqrt.pop %v70
    %v84 = vmul.f32 %v83, %v70
    %v85 = vmul.f32 %v84, %v83
    %v86 = vmul.f32 0.5, %v85
    %v87 = vsub.f32 1.5, %v86
    %v88 = vmul.f32 %v83, %v87
    %v89 = vmul.f32 %v70, %v88
    %vm90 = vcmp.eq.f32.partialorder %v70, inf
    %v91 = vsel %vm90, %v70, %v89
    %vm92 = vcmp.eq.f32.partialorder %v70, 0.0
    %v93 = vand.u32 %v70, 2147483648
    %v94 = vsel %vm92, %v93, %v91
    %v95 = vld [vmem:[#allocation7] sm:$0xff]
    %v96 = vadd.f32 %v82, %v94
    %v97 = vadd.f32 %v95, %v96
    %98 = vst [vmem:[#allocation7] sm:$0xff] %v97
    // Predicated region
    $region22: #{tpu_custom_call.1} parent=1 // pred_check
      _
    $region23: #{tpu_custom_call.1} parent=1 // pred_check_branch
      %100 = sbr.rel (0) target = $region25
    $region24: #{tpu_custom_call.1} parent=1 // pred_region
      %102 = vsyncadd [#allocation4], 0
      %s104 = sshll.u32 [#allocation7], 4
      %s105 = int_to_ptr.vmem [resolvable:$true] %s104
      %s106 = sshll.u32 %s2, 4
      %s107 = int_to_ptr.hbm [resolvable:$true] %s106
      %109 = dma.vmem_to_hbm [thread:$0]  %s105, 128, %s107, [#allocation4]
    $region25: #{tpu_custom_call.1} parent=1 // pred_fallthru
      _
    // Predicated region
    $region26: #{tpu_custom_call.1} parent=1 // pred_check
      _
    $region27: #{tpu_custom_call.1} parent=1 // pred_check_branch
      %111 = sbr.rel (0) target = $region29
    $region28: #{tpu_custom_call.1} parent=1 // pred_region
      %113 = dma.done [#allocation4], 128
    $region29: #{tpu_custom_call.1} parent=1 // pred_fallthru
      _
    %114 = vsyncpa [#allocation3], 1
    %115 = vsyncpa [#allocation6], 1
    %116 = vsyncpa [#allocation4], 1

</llo_original>
